<compile_context>
chip_gen: v5e
topology: v5e:2x2
jax: 0.10.0
libtpu: 0.0.40
codegen_flags: <defaults>
</compile_context>

<pallas_src>
import math
from functools import partial

import jax
import jax.numpy as jnp
from jax.experimental import pallas as pl
from jax.experimental.pallas import tpu as pltpu


def _pe_add_kernel(p, seed_ref, x_ref, pe_ref, o_ref):
    # x_ref, pe_ref, o_ref: (1, ts, D) tiles in VMEM; seed_ref: (1, 1) in SMEM.
    y = x_ref[...] + pe_ref[...]
    if p >= 1.0:                       # static Python branch (p is a constant)
        y = jnp.zeros_like(y)
    elif p > 0.0:
        # Unique per-tile step id (valid for either grid ordering), mixed with
        # the seed through an odd-constant hash to decorrelate tile streams.
        step = pl.program_id(0) * pl.num_programs(1) + pl.program_id(1)
        mixed = seed_ref[0, 0] ^ (step * jnp.int32(-1640531527))  # 0x9E3779B9
        pltpu.prng_seed(mixed)
        bits = pltpu.prng_random_bits(y.shape)                    # uint32
        thr = jnp.uint32(p * float(2**32 - 1))
        keep = bits >= thr
        scale = jnp.asarray(1.0 / (1.0 - p), y.dtype)
        y = jnp.where(keep, y * scale, jnp.zeros_like(y))
    o_ref[...] = y.astype(o_ref.dtype)


def make_positional_encoding(seq_length: int, d_model: int) -> jnp.ndarray:
    """Same table as the PyTorch module's `pe` buffer, shape (seq_length, d_model)."""
    pos = jnp.arange(seq_length, dtype=jnp.float32)[:, None]            # (S, 1)
    div = jnp.exp(
        jnp.arange(0, d_model, 2, dtype=jnp.float32)
        * -(math.log(10000.0) / d_model)
    )                                                                    # (ceil(D/2),)
    ang = pos * div                                                      # (S, ceil(D/2))
    pe = jnp.zeros((seq_length, d_model), jnp.float32)
    n_sin = (d_model + 1) // 2
    n_cos = d_model // 2
    pe = pe.at[:, 0::2].set(jnp.sin(ang)[:, :n_sin])
    pe = pe.at[:, 1::2].set(jnp.cos(ang)[:, :n_cos])
    return pe


def _round_up(a: int, m: int) -> int:
    return ((a + m - 1) // m) * m


def _pick_seq_tile(S: int, D: int, itemsize: int) -> int:
    """Byte-based seq-tile sizing (lane-pad-aware), capped by a conservative
    VMEM budget that fits the default scoped VMEM on v5e/v6e/v7x."""
    mult = 8 if itemsize >= 4 else 16          # sublane packing constraint
    d_lanes = _round_up(D, 128)                # VMEM lane-pads the last dim
    # Three streams (x-in, pe-in, out), each double-buffered, pe in x.dtype.
    per_row = 2 * 3 * d_lanes * itemsize
    vmem_budget = 12 * 1024 * 1024
    ts_cap = max(mult, vmem_budget // per_row)
    ts_cap = (ts_cap // mult) * mult
    ts = min(ts_cap, _round_up(S, mult))
    return max(ts, mult)


def positional_encoding(x, pe, *, dropout_p: float = 0.0, seed: int = 0):
    """x: (B, S, D); pe: (S_pe, D) table with S_pe >= S. Returns x + pe[:S] (+ dropout)."""
    B, S, D = x.shape
    assert pe.shape[-1] == D and pe.shape[0] >= S
    itemsize = jnp.dtype(x.dtype).itemsize
    ts = _pick_seq_tile(S, D, itemsize)
    n_seq = pl.cdiv(S, ts)                     # partial tail tile is masked by Pallas

    # Cast pe to the activation dtype in the wrapper (one tiny table copy at
    # most) so the kernel does no per-element cast and DMAs fewer bytes.
    # Note: for bf16 x this adds bf16(pe) rather than torch's f32-add-then-cast.
    pe3 = pe.astype(x.dtype).reshape(1, pe.shape[0], D)
    seed_s = jnp.asarray(seed, jnp.int32).reshape(1, 1)

    if n_seq >= 2:
        # seq tiles outer ("parallel" for megacore), batch inner ("arbitrary")
        # -> pe block index constant across batch steps -> pe tile stays
        # resident in VMEM and its DMA is skipped.
        grid = (n_seq, B)
        x_map = lambda s, b: (b, s, 0)
        pe_map = lambda s, b: (0, s, 0)
    else:
        # Single seq tile: put batch outside so the parallel axis has >= 2
        # iterations; pe's block index is always (0, 0, 0) so it stays resident.
        grid = (B, n_seq)
        x_map = lambda b, s: (b, s, 0)
        pe_map = lambda b, s: (0, s, 0)

    # pe is fetched once per seq tile (resident across batch), not B times.
    bytes_accessed = (2 * B * S * D + S * D) * itemsize

    out = pl.pallas_call(
        partial(_pe_add_kernel, float(dropout_p)),
        out_shape=jax.ShapeDtypeStruct((B, S, D), x.dtype),
        grid=grid,
        in_specs=[
            pl.BlockSpec(memory_space=pltpu.MemorySpace.SMEM),   # seed
            pl.BlockSpec((1, ts, D), x_map),                     # x tile
            pl.BlockSpec((1, ts, D), pe_map),                    # pe tile
        ],
        out_specs=pl.BlockSpec((1, ts, D), x_map),
        compiler_params=pltpu.CompilerParams(
            dimension_semantics=("parallel", "arbitrary"),
        ),
        cost_estimate=pl.CostEstimate(
            flops=B * S * D,
            transcendentals=0,
            bytes_accessed=bytes_accessed,
        ),
    )(seed_s, x, pe3)
    return out


if __name__ == "__main__":
    key = jax.random.PRNGKey(0)
    B, S, D = 2, 8, 32
    dropout_p = 0.0  # inference: dropout is identity (deterministic check)
    # TODO(synk): torch's dropout RNG stream is not reproducible on TPU; for
    # dropout_p > 0 the kernel uses the TPU hardware PRNG (different stream).

    x = jax.random.normal(key, (B, S, D), dtype=jnp.float32)
    pe = make_positional_encoding(S, D)

    y = positional_encoding(x, pe, dropout_p=dropout_p, seed=0)
    y = jax.block_until_ready(y)

    # Pure-JAX reference (same forward semantics as the PyTorch module, eval mode)
    y_ref = x + pe[None, :, :]
    assert jnp.allclose(y, y_ref, atol=1e-6, rtol=1e-6)

    print("KERNEL_OK")
</pallas_src>

<mosaic_0001>
module attributes {stable_mosaic.version = 11 : i64} {
  func.func @_pe_add_kernel(%arg0: i32, %arg1: i32, %arg2: memref<1x1xi32, #tpu.memory_space<smem>>, %arg3: memref<1x8x32xf32, #tpu.memory_space<vmem>>, %arg4: memref<1x8x32xf32, #tpu.memory_space<vmem>>, %arg5: memref<1x8x32xf32, #tpu.memory_space<vmem>>) attributes {dimension_semantics = [#tpu.dimension_semantics<parallel>, #tpu.dimension_semantics<arbitrary>], iteration_bounds = array<i64: 2, 1>, scalar_prefetch = 0 : i64, scratch_operands = 0 : i64, tpu.core_type = #tpu.core_type<tc>, window_params = [{transform_indices = @transform_0, window_bounds = array<i64: 1, 1>}, {transform_indices = @transform_1, window_bounds = array<i64: 1, 8, 32>}, {transform_indices = @transform_2, window_bounds = array<i64: 1, 8, 32>}, {transform_indices = @transform_3, window_bounds = array<i64: 1, 8, 32>}]} {
    %c0 = arith.constant 0 : index
    %c0_0 = arith.constant 0 : index
    %c0_1 = arith.constant 0 : index
    %0 = vector.load %arg3[%c0, %c0_0, %c0_1] : memref<1x8x32xf32, #tpu.memory_space<vmem>>, vector<1x8x32xf32>
    %c0_2 = arith.constant 0 : index
    %c0_3 = arith.constant 0 : index
    %c0_4 = arith.constant 0 : index
    %1 = vector.load %arg4[%c0_2, %c0_3, %c0_4] : memref<1x8x32xf32, #tpu.memory_space<vmem>>, vector<1x8x32xf32>
    %2 = arith.addf %0, %1 : vector<1x8x32xf32>
    %c0_5 = arith.constant 0 : index
    %c0_6 = arith.constant 0 : index
    %c0_7 = arith.constant 0 : index
    %3 = vector.load %arg5[%c0_5, %c0_6, %c0_7] : memref<1x8x32xf32, #tpu.memory_space<vmem>>, vector<1x8x32xf32>
    tpu.vector_store %arg5[%c0_5, %c0_6, %c0_7], %2 {strides = array<i32>} : memref<1x8x32xf32, #tpu.memory_space<vmem>>, vector<1x8x32xf32>,
    return
  }
  func.func @transform_0(%arg0: i32, %arg1: i32) -> (i32, i32) {
    %c0_i32 = arith.constant 0 : i32
    %c0_i32_0 = arith.constant 0 : i32
    %c0_i32_1 = arith.constant 0 : i32
    return %c0_i32, %c0_i32_0 : i32, i32
  }
  func.func @transform_1(%arg0: i32, %arg1: i32) -> (i32, i32, i32) {
    %c0_i32 = arith.constant 0 : i32
    %c0_i32_0 = arith.constant 0 : i32
    return %arg0, %arg1, %c0_i32 : i32, i32, i32
  }
  func.func @transform_2(%arg0: i32, %arg1: i32) -> (i32, i32, i32) {
    %c0_i32 = arith.constant 0 : i32
    %c0_i32_0 = arith.constant 0 : i32
    %c0_i32_1 = arith.constant 0 : i32
    return %c0_i32, %arg1, %c0_i32_0 : i32, i32, i32
  }
  func.func @transform_3(%arg0: i32, %arg1: i32) -> (i32, i32, i32) {
    %c0_i32 = arith.constant 0 : i32
    %c0_i32_0 = arith.constant 0 : i32
    return %arg0, %arg1, %c0_i32 : i32, i32, i32
  }
}

</mosaic_0001>

<llo_original>
// kernel: tpu_custom_call.1
$region0: #{tpu_custom_call.1}
  #allocation0 [shape = 'u32[]', space=smem, size = 0x4, offset = 0x4, fixed_abs, tag = 'smem constant byte address 0x4 - core index']
  #allocation1 [shape = 'u32[72,128]{1,0:T(1,128)}', space=vmem, size = 0x9000, scoped, tag = 'internal scratch']
  #allocation2 [shape = 's32[1,1]{1,0:T(1,128)S(6)}', space=smem, size = 0x200, scoped, tag = 'scoped memory for tpu_custom_call.1']
  %s0 = inlined_call_operand.<no memory space> [shape: s32[1,1], index: 0, kind: input, shape index: {}]
  %s1 = inlined_call_operand.hbm [shape: f32[2,8,32], index: 1, kind: input, shape index: {}]
  %s2 = inlined_call_operand.hbm [shape: f32[1,8,32], index: 2, kind: input, shape index: {}]
  %s3 = inlined_call_operand.hbm [shape: f32[2,8,32], index: 3, kind: output, shape index: {}]
  %s4 = sld [smem:[#allocation0]]
  $region53: #{tpu_custom_call.1} parent=0
    _
  %s6 = ssub.s32 1, %s4
  %s7 = scalar_select 0, %s6, %s4
  %8 = sst [smem:[#allocation2]] %s0
  $region1: #{tpu_custom_call.1} parent=0
    #allocation3 [shape = 'u8[8192]{0}', space=vmem, size = 0x2000, scoped, tag = 'input window, operand 1']
    #allocation4 [shape = 's32[2]{0}', space=sflag, size = 0x8, scoped, tag = 'scoped memory for tpu_custom_call.1']
    #allocation5 [shape = 's32[2]{0}', space=sflag, size = 0x8, scoped, tag = 'scoped memory for tpu_custom_call.1']
    #allocation6 [shape = 'u8[4096]{0}', space=vmem, size = 0x1000, scoped, tag = 'input window, operand 2, single buffered']
    #allocation7 [shape = 's32[1]{0}', space=sflag, size = 0x4, scoped, tag = 'scoped memory for tpu_custom_call.1']
    #allocation8 [shape = 'u8[8192]{0}', space=vmem, size = 0x2000, scoped, tag = 'output window, operand 0']
    %9 = vsyncpa [#allocation4], 0
    %s10 = scalar_lea.sflag [#allocation4], 1
    %11 = vsyncpa %s10, 0
    %12 = vsyncpa [#allocation7], 0
    %13 = vsyncpa [#allocation5], 0
    %s14 = scalar_lea.sflag [#allocation5], 1
    %15 = vsyncpa %s14, 0
    loop: start=0, step=1, limit=4
    $region2: #{tpu_custom_call.1} parent=1 // loop_pre_header
      _
    $region3: #{tpu_custom_call.1} parent=1 // loop_header
      %s17 = sphi 0, %s21
      %p18 = scmp.ge.s32.totalorder %s17, 4
      %s24 = sphi 0, %s36
      %s25 = sphi 0, %s32
      %s26 = sphi 0, %s24
      %s27 = sphi 0, %s25
      %s28 = sphi 0, %s26
      %s29 = sphi 0, %s27
      %s37 = sphi 0, %s37
      %s39 = sphi 0, %s37
      %s40 = sphi 0, %s39
      %s54 = sphi 0, %s40
      %s62 = sphi 0, %s64
      %s65 = sphi 0, %s62
      %s66 = sphi 0, %s65
      %s82 = sphi 0, %s66
      %s88 = sphi 0, %s90
      %s91 = sphi 0, %s88
      %s92 = sphi 0, %s91
      %s108 = sphi 0, %s92
      %s116 = sphi 0, %s118
      %s119 = sphi 0, %s116
      %s120 = sphi 0, %s119
      %s136 = sphi 0, %s120
    $region4: #{tpu_custom_call.1} parent=1 // loop_header_branch
      %20 = sbr.rel (%p18) target = $region8
    $region5: #{tpu_custom_call.1} parent=1 // loop_body
      %s22 = ssub.s32 %s17, 1
      %s23 = ssub.s32 %s17, 2
      %s30 = sadd.s32 1, %s25
      %p31 = scmp.ge.s32.totalorder %s30, 1
      %s32 = scalar_select %p31, 0, %s30
      %s33 = sadd.s32 1, %s24
      %s34 = scalar_select %p31, %s33, %s24
      %p35 = scmp.ge.s32.totalorder %s34, 2
      %s36 = scalar_select %p35, 0, %s34
      %s38 = sadd.s32 %s37, 1
      %p41 = scmp.eq.s32.totalorder %s17, 1
      %p42 = scmp.ne.s32.totalorder %s37, %s39
      %p43 = scmp.eq.s32.totalorder %s17, 0
      %p44 = por %p42, %p43
      %p45 = scmp.ne.s32.totalorder %s37, %s39
      %p46 = scmp.eq.s32.totalorder %s22, 1
      %p47 = por %p45, %p46
      %p48 = scmp.ne.s32.totalorder %s39, %s40
      %p49 = scmp.eq.s32.totalorder %s22, 0
      %p50 = por %p48, %p49
      %p51 = scmp.ne.s32.totalorder %s39, %s40
      %p52 = scmp.eq.s32.totalorder %s23, 1
      %p53 = por %p51, %p52
      %p55 = scmp.ne.s32.totalorder %s40, %s54
      %p56 = scmp.eq.s32.totalorder %s23, 0
      %p57 = por %p55, %p56
      %s58 = ssub.s32 %s24, %s36
      %s59 = ssub.s32 %s25, %s32
      %s60 = sor.u32 %s58, %s59
      %p61 = scmp.eq.s32.totalorder %s60, 0
      %s63 = sadd.s32 %s62, 1
      %s64 = scalar_select %p61, %s62, %s63
      %p67 = pneg %p61
      %p68 = scmp.eq.s32.totalorder %s17, 1
      %p69 = por %p67, %p68
      %p70 = scmp.ne.s32.totalorder %s62, %s65
      %p71 = scmp.eq.s32.totalorder %s17, 0
      %p72 = por %p70, %p71
      %p73 = scmp.ne.s32.totalorder %s62, %s65
      %p74 = scmp.eq.s32.totalorder %s22, 1
      %p75 = por %p73, %p74
      %p76 = scmp.ne.s32.totalorder %s65, %s66
      %p77 = scmp.eq.s32.totalorder %s22, 0
      %p78 = por %p76, %p77
      %p79 = scmp.ne.s32.totalorder %s65, %s66
      %p80 = scmp.eq.s32.totalorder %s23, 1
      %p81 = por %p79, %p80
      %p83 = scmp.ne.s32.totalorder %s66, %s82
      %p84 = scmp.eq.s32.totalorder %s23, 0
      %p85 = por %p83, %p84
      %s86 = ssub.s32 %s25, %s32
      %p87 = scmp.eq.s32.totalorder %s86, 0
      %s89 = sadd.s32 %s88, 1
      %s90 = scalar_select %p87, %s88, %s89
      %p93 = pneg %p87
      %p94 = scmp.eq.s32.totalorder %s17, 1
      %p95 = por %p93, %p94
      %p96 = scmp.ne.s32.totalorder %s88, %s91
      %p97 = scmp.eq.s32.totalorder %s17, 0
      %p98 = por %p96, %p97
      %p99 = scmp.ne.s32.totalorder %s88, %s91
      %p100 = scmp.eq.s32.totalorder %s22, 1
      %p101 = por %p99, %p100
      %p102 = scmp.ne.s32.totalorder %s91, %s92
      %p103 = scmp.eq.s32.totalorder %s22, 0
      %p104 = por %p102, %p103
      %p105 = scmp.ne.s32.totalorder %s91, %s92
      %p106 = scmp.eq.s32.totalorder %s23, 1
      %p107 = por %p105, %p106
      %p109 = scmp.ne.s32.totalorder %s92, %s108
      %p110 = scmp.eq.s32.totalorder %s23, 0
      %p111 = por %p109, %p110
      %s112 = ssub.s32 %s24, %s36
      %s113 = ssub.s32 %s25, %s32
      %s114 = sor.u32 %s112, %s113
      %p115 = scmp.eq.s32.totalorder %s114, 0
      %s117 = sadd.s32 %s116, 1
      %s118 = scalar_select %p115, %s116, %s117
      %p121 = pneg %p115
      %p122 = scmp.eq.s32.totalorder %s17, 1
      %p123 = por %p121, %p122
      %p124 = scmp.ne.s32.totalorder %s116, %s119
      %p125 = scmp.eq.s32.totalorder %s17, 0
      %p126 = por %p124, %p125
      %p127 = scmp.ne.s32.totalorder %s116, %s119
      %p128 = scmp.eq.s32.totalorder %s22, 1
      %p129 = por %p127, %p128
      %p130 = scmp.ne.s32.totalorder %s119, %s120
      %p131 = scmp.eq.s32.totalorder %s22, 0
      %p132 = por %p130, %p131
      %p133 = scmp.ne.s32.totalorder %s119, %s120
      %p134 = scmp.eq.s32.totalorder %s23, 1
      %p135 = por %p133, %p134
      %p137 = scmp.ne.s32.totalorder %s120, %s136
      %p138 = scmp.eq.s32.totalorder %s23, 0
      %p139 = por %p137, %p138
      %p140 = scmp.le.s32.totalorder 1, %s17
      %p141 = scmp.lt.s32.totalorder %s17, 3
      %p142 = pnand %p140, %p141
      %p143 = pneg %p142
      // Predicated region
      $region9: #{tpu_custom_call.1} parent=5 // pred_check
        _
      $region10: #{tpu_custom_call.1} parent=5 // pred_check_branch
        %145 = sbr.rel (%p142) target = $region12
      $region11: #{tpu_custom_call.1} parent=5 // pred_region
        %s146 = ssub.s32 %s17, 1
        // Predicated region
        $region13: #{tpu_custom_call.1} parent=11 // pred_check
          %p147 = pneg %p50
        $region14: #{tpu_custom_call.1} parent=11 // pred_check_branch
          %149 = sbr.rel (%p147) target = $region16
        $region15: #{tpu_custom_call.1} parent=11 // pred_region
          _
        $region16: #{tpu_custom_call.1} parent=11 // pred_fallthru
          _
        // Predicated region
        $region17: #{tpu_custom_call.1} parent=11 // pred_check
          %p150 = pneg %p104
        $region18: #{tpu_custom_call.1} parent=11 // pred_check_branch
          %152 = sbr.rel (%p150) target = $region20
        $region19: #{tpu_custom_call.1} parent=11 // pred_region
          %154 = vsyncadd [#allocation7], 0
          %s155 = smul.addr %s27, 8
          %s156 = scalar_lea.hbm %s2, %s155
          %s158 = sshll.u32 %s156, 4
          %s159 = int_to_ptr.hbm [resolvable:$true] %s158
          %s160 = sshll.u32 [#allocation6], 4
          %s161 = int_to_ptr.vmem [resolvable:$true] %s160
          %163 = dma.hbm_to_vmem [thread:$0]  %s159, 128, %s161, [#allocation7]
        $region20: #{tpu_custom_call.1} parent=11 // pred_fallthru
          _
      $region12: #{tpu_custom_call.1} parent=5 // pred_fallthru
        _
      %p164 = scmp.lt.s32.totalorder %s17, 2
      // Predicated region
      $region21: #{tpu_custom_call.1} parent=5 // pred_check
        %p165 = pneg %p164
      $region22: #{tpu_custom_call.1} parent=5 // pred_check_branch
        %167 = sbr.rel (%p165) target = $region24
      $region23: #{tpu_custom_call.1} parent=5 // pred_region
        // Predicated region
        $region25: #{tpu_custom_call.1} parent=23 // pred_check
          %p168 = pneg %p72
        $region26: #{tpu_custom_call.1} parent=23 // pred_check_branch
          %170 = sbr.rel (%p168) target = $region28
        $region27: #{tpu_custom_call.1} parent=23 // pred_region
          %s171 = sand.u32 %s62, 1
          %s172 = scalar_lea.sflag [#allocation4], %s171
          %s173 = sand.u32 %s62, 1
          %s174 = smul.addr %s173, 8
          %s175 = scalar_lea.vmem [#allocation3], %s174
          %177 = vsyncadd %s172, 0
          %s178 = sadd.s32 %s25, %s24
          %s179 = smul.addr %s178, 8
          %s180 = scalar_lea.hbm %s1, %s179
          %s182 = sshll.u32 %s180, 4
          %s183 = int_to_ptr.hbm [resolvable:$true] %s182
          %s184 = sshll.u32 %s175, 4
          %s185 = int_to_ptr.vmem [resolvable:$true] %s184
          %187 = dma.hbm_to_vmem [thread:$0]  %s183, 128, %s185, %s172
        $region28: #{tpu_custom_call.1} parent=23 // pred_fallthru
          _
      $region24: #{tpu_custom_call.1} parent=5 // pred_fallthru
        _
      %p188 = scmp.le.s32.totalorder 1, %s17
      %p189 = scmp.lt.s32.totalorder %s17, 3
      %p190 = pnand %p188, %p189
      %p191 = pneg %p190
      // Predicated region
      $region29: #{tpu_custom_call.1} parent=5 // pred_check
        _
      $region30: #{tpu_custom_call.1} parent=5 // pred_check_branch
        %193 = sbr.rel (%p190) target = $region32
      $region31: #{tpu_custom_call.1} parent=5 // pred_region
        %s194 = ssub.s32 %s17, 1
        %s195 = sand.u32 %s65, 1
        %s196 = scalar_lea.sflag [#allocation4], %s195
        %s197 = sand.u32 %s65, 1
        %s198 = smul.addr %s197, 8
        %s199 = scalar_lea.vmem [#allocation3], %s198
        // Predicated region
        $region33: #{tpu_custom_call.1} parent=31 // pred_check
          %p200 = pneg %p78
        $region34: #{tpu_custom_call.1} parent=31 // pred_check_branch
          %202 = sbr.rel (%p200) target = $region36
        $region35: #{tpu_custom_call.1} parent=31 // pred_region
          %204 = dma.done %s196, 128
        $region36: #{tpu_custom_call.1} parent=31 // pred_fallthru
          _
        // Predicated region
        $region37: #{tpu_custom_call.1} parent=31 // pred_check
          %p205 = pneg %p104
        $region38: #{tpu_custom_call.1} parent=31 // pred_check_branch
          %207 = sbr.rel (%p205) target = $region40
        $region39: #{tpu_custom_call.1} parent=31 // pred_region
          %209 = dma.done [#allocation7], 128
        $region40: #{tpu_custom_call.1} parent=31 // pred_fallthru
          _
        %p210 = pneg %p50
        %p211 = pneg %p47
        %s212 = sand.u32 %s65, 1
        %s213 = scalar_lea.sflag [#allocation4], %s212
        %s214 = sand.u32 %s65, 1
        %s215 = smul.addr %s214, 8
        %s216 = scalar_lea.vmem [#allocation3], %s215
        %p217 = pneg %p78
        %p218 = pneg %p75
        %p219 = pneg %p104
        %p220 = pneg %p101
        %p221 = pneg %p132
        %p222 = pneg %p129
        %s223 = sand.u32 %s119, 1
        %s224 = scalar_lea.sflag [#allocation5], %s223
        %s225 = sand.u32 %s119, 1
        %s226 = smul.addr %s225, 8
        %s227 = scalar_lea.vmem [#allocation8], %s226
        %v228 = vld [vmem:[%s199] sm:$0xff]
        %v229 = vld [vmem:[#allocation6] sm:$0xff]
        %v230 = vadd.f32 %v228, %v229
        %vm231 = vcmask 261120
        %232 = vst.msk [vmem:[%s227] sm:$0xff] %vm231, %v230
        %s233 = sand.u32 %s119, 1
        %s234 = scalar_lea.sflag [#allocation5], %s233
        %s235 = sand.u32 %s119, 1
        %s236 = smul.addr %s235, 8
        %s237 = scalar_lea.vmem [#allocation8], %s236
        // Predicated region
        $region41: #{tpu_custom_call.1} parent=31 // pred_check
          %p238 = pneg %p129
        $region42: #{tpu_custom_call.1} parent=31 // pred_check_branch
          %240 = sbr.rel (%p238) target = $region44
        $region43: #{tpu_custom_call.1} parent=31 // pred_region
          %242 = vsyncadd %s234, 0
          %s243 = sadd.s32 %s27, %s26
          %s244 = smul.addr %s243, 8
          %s245 = scalar_lea.hbm %s3, %s244
          %s247 = sshll.u32 %s237, 4
          %s248 = int_to_ptr.vmem [resolvable:$true] %s247
          %s249 = sshll.u32 %s245, 4
          %s250 = int_to_ptr.hbm [resolvable:$true] %s249
          %252 = dma.vmem_to_hbm [thread:$0]  %s248, 128, %s250, %s234
        $region44: #{tpu_custom_call.1} parent=31 // pred_fallthru
          _
      $region32: #{tpu_custom_call.1} parent=5 // pred_fallthru
        _
      %p253 = scmp.le.s32.totalorder 2, %s17
      // Predicated region
      $region45: #{tpu_custom_call.1} parent=5 // pred_check
        %p254 = pneg %p253
      $region46: #{tpu_custom_call.1} parent=5 // pred_check_branch
        %256 = sbr.rel (%p254) target = $region48
      $region47: #{tpu_custom_call.1} parent=5 // pred_region
        %s257 = ssub.s32 %s17, 2
        // Predicated region
        $region49: #{tpu_custom_call.1} parent=47 // pred_check
          %p258 = pneg %p135
        $region50: #{tpu_custom_call.1} parent=47 // pred_check_branch
          %260 = sbr.rel (%p258) target = $region52
        $region51: #{tpu_custom_call.1} parent=47 // pred_region
          %s261 = sand.u32 %s120, 1
          %s262 = scalar_lea.sflag [#allocation5], %s261
          %s263 = sand.u32 %s120, 1
          %s264 = smul.addr %s263, 8
          %s265 = scalar_lea.vmem [#allocation8], %s264
          %267 = dma.done %s262, 128
        $region52: #{tpu_custom_call.1} parent=47 // pred_fallthru
          _
      $region48: #{tpu_custom_call.1} parent=5 // pred_fallthru
        _
    $region6: #{tpu_custom_call.1} parent=1 // loop_footer
      %s21 = sadd.s32 1, %s17
    $region7: #{tpu_custom_call.1} parent=1 // loop_footer_branch
      %16 = sbr.rel target = $region3
    $region8: #{tpu_custom_call.1} parent=1 // loop_exit
      _
    %268 = vsyncpa [#allocation4], 1
    %s269 = scalar_lea.sflag [#allocation4], 1
    %270 = vsyncpa %s269, 1
    %271 = vsyncpa [#allocation7], 1
    %272 = vsyncpa [#allocation5], 1
    %s273 = scalar_lea.sflag [#allocation5], 1
    %274 = vsyncpa %s273, 1

</llo_original>
